<compile_context>
chip_gen: v7x
topology: tpu7x:2x2x1
jax: 0.10.0
libtpu: 0.0.40
codegen_flags: <defaults>
</compile_context>

<pallas_src>
import functools

import jax
import jax.numpy as jnp
from jax import lax
from jax.experimental import pallas as pl
from jax.experimental.pallas import tpu as pltpu

NEG_SLOPE = 0.01  # nn.LeakyReLU() default negative_slope


# ---------------------------------------------------------------------------
# Fused kernel: (shared+private) conv3x3 + LeakyReLU + global-avg-pool + heads
# One grid step == B_TILE images (batch flattened into the lane axis).
# ---------------------------------------------------------------------------
def _dsn_fused_kernel(x_ref, m_ref, w_ref, b_ref, wh_ref, bh_ref,
                      shared_ref, private_ref, heads_ref,
                      *, H, W, cout, b_tile):
    # x_ref      : (Cin_pad, L)          L = B_TILE*H*W, batch in lane axis
    # m_ref      : (9, L)                constant 0/1 boundary masks per tap
    # w_ref      : (2*Cout, 9*Cin_pad)   shared|private conv weights, bf16
    # b_ref      : (2*Cout, 1)           conv biases, f32
    # wh_ref     : (Cout, nc+2)          classifier|domain head weights (fused)
    # bh_ref     : (1, nc+2)             head biases
    # shared_ref : (B_TILE, Cout, HW)    lane-dense flattened-NCHW output
    # private_ref: (B_TILE, Cout, HW)
    # heads_ref  : (B_TILE, 1, nc+2)     [class logits | domain logits]
    HW = H * W
    L = b_tile * HW

    x = x_ref[...]                        # (Cin_pad, L) f32
    masks = m_ref[...]                    # (9, L) f32 {0, 1}

    # im2col: 9 shifted+masked copies of x stacked along the sublane axis.
    # Shifts via pltpu.roll (XLU) stay lane-dense; the wrap across image
    # boundaries only touches positions that the boundary mask zeroes anyway.
    taps = []
    t = 0
    for dy in (-1, 0, 1):
        for dx in (-1, 0, 1):
            d = dy * W + dx
            shifted = x if d == 0 else pltpu.roll(x, shift=(-d) % L, axis=1)
            if dy == 0 and dx == 0:
                taps.append(shifted)                       # center: always valid
            else:
                taps.append(shifted * masks[t:t + 1, :])   # one vmul per tap
            t += 1
    # Cin_pad is a multiple of 8, so each tap is whole sublane tiles and this
    # concat is pure vreg stacking (no sublane relayout).
    patches = jnp.concatenate(taps, axis=0)                # (9*Cin_pad, L) f32

    # Single MXU push producing BOTH encoders' outputs for all B_TILE images.
    # bf16 operands, f32 accumulation.
    acc = jnp.dot(w_ref[...], patches.astype(w_ref.dtype),
                  preferred_element_type=jnp.float32)      # (2*Cout, L) f32
    acc = acc + b_ref[...]                                 # per-channel bias
    act = jnp.where(acc > 0, acc, NEG_SLOPE * acc)         # LeakyReLU (f32)

    # Per-image lane slices (width HW, multiple of 128 -> unmasked stores),
    # plus the heads epilogue while the shared features are still in vregs.
    # (GradientReverseLayer is identity in the forward pass.)
    inv_hw = jnp.float32(1.0 / HW)
    for b in range(b_tile):
        blk = act[:, b * HW:(b + 1) * HW]                  # (2*Cout, HW)
        shared_b = blk[:cout]
        shared_ref[b] = shared_b.astype(shared_ref.dtype)
        private_ref[b] = blk[cout:].astype(private_ref.dtype)

        pooled = jnp.sum(shared_b, axis=1, keepdims=True) * inv_hw   # (Cout, 1)
        logits = jnp.sum(pooled * wh_ref[...], axis=0, keepdims=True) + bh_ref[...]
        heads_ref[b] = logits.astype(heads_ref.dtype)      # (1, nc+2)


# ---------------------------------------------------------------------------
# Wrapper: one pallas_call for the whole forward pass
# ---------------------------------------------------------------------------
@functools.partial(jax.jit, static_argnames=("task_ind",))
def dsn_no_decoder_forward(params, x_nchw, task_ind):
    assert task_ind in (1, 2)
    N, Cin, H, W = x_nchw.shape
    HW = H * W
    assert HW % 128 == 0, "H*W must be a multiple of 128 for lane-dense blocks"
    Cin_pad = ((Cin + 7) // 8) * 8        # tile-aligned im2col taps

    w_sh, b_sh = params["shared"]
    w_pr, b_pr = (params["private_source"] if task_ind == 1
                  else params["private_target"])
    Cout = w_sh.shape[-1]
    wc, bc = params["classifier"]
    wd, bd = params["domain"]
    num_classes = wc.shape[1]
    n_heads = num_classes + 2

    # Batch tile: largest divisor of N up to 8 (amortizes per-step overhead).
    b_tile = 1
    for d in range(1, min(N, 8) + 1):
        if N % d == 0:
            b_tile = d
    L = b_tile * HW

    # (3,3,Cin,Cout) HWIO -> (Cout, 9*Cin_pad), tap-major rows matching the
    # kernel's im2col ordering (padded Cin rows are zero); concat shared &
    # private along Cout => one fused matmul. Weights cast to bf16 once here.
    def prep(w):
        w_p = jnp.pad(w, ((0, 0), (0, 0), (0, Cin_pad - Cin), (0, 0)))
        return w_p.reshape(9 * Cin_pad, Cout).T

    w_all = jnp.concatenate([prep(w_sh), prep(w_pr)], axis=0).astype(jnp.bfloat16)
    b_all = jnp.concatenate([b_sh, b_pr]).reshape(2 * Cout, 1).astype(jnp.float32)
    w_heads = jnp.concatenate([wc, wd], axis=1)                 # (Cout, nc+2)
    b_heads = jnp.concatenate([bc, bd]).reshape(1, n_heads)

    # NCHW -> (Cin_pad, N*HW): batch flattened into the lane axis (one small
    # input-side transpose; outputs stay native flattened-NCHW, no transpose).
    x_cn = jnp.transpose(x_nchw, (1, 0, 2, 3)).reshape(Cin, N * HW)
    x_prep = jnp.pad(x_cn, ((0, Cin_pad - Cin), (0, 0))).astype(jnp.float32)

    # Constant per-tap boundary masks (padding=1 semantics), hoisted out of
    # the kernel body; repeats per image within the batch tile.
    p = jnp.arange(L, dtype=jnp.int32) % HW
    yy = p // W
    xx = p % W
    mask_rows = []
    for dy in (-1, 0, 1):
        for dx in (-1, 0, 1):
            mask_rows.append((yy + dy >= 0) & (yy + dy < H) &
                             (xx + dx >= 0) & (xx + dx < W))
    masks = jnp.stack(mask_rows, axis=0).astype(jnp.float32)    # (9, L)

    kernel = functools.partial(_dsn_fused_kernel, H=H, W=W, cout=Cout,
                               b_tile=b_tile)
    shared_f, private_f, heads = pl.pallas_call(
        kernel,
        out_shape=(
            # TODO(synk): emit bf16 feature maps here if downstream allows
            # (halves HBM writeback, the roofline at these channel counts).
            jax.ShapeDtypeStruct((N, Cout, HW), jnp.float32),
            jax.ShapeDtypeStruct((N, Cout, HW), jnp.float32),
            jax.ShapeDtypeStruct((N, 1, n_heads), jnp.float32),
        ),
        grid=(N // b_tile,),
        in_specs=[
            pl.BlockSpec((Cin_pad, L), lambda n: (0, n)),
            pl.BlockSpec((9, L), lambda n: (0, 0)),
            # TODO(synk): for large Cout/Cin, use pipeline_mode=pl.Buffered(1)
            # on these constant-index weight inputs to save VMEM on v7x.
            pl.BlockSpec((2 * Cout, 9 * Cin_pad), lambda n: (0, 0)),
            pl.BlockSpec((2 * Cout, 1), lambda n: (0, 0)),
            pl.BlockSpec((Cout, n_heads), lambda n: (0, 0)),
            pl.BlockSpec((1, n_heads), lambda n: (0, 0)),
        ],
        out_specs=(
            pl.BlockSpec((b_tile, Cout, HW), lambda n: (n, 0, 0)),
            pl.BlockSpec((b_tile, Cout, HW), lambda n: (n, 0, 0)),
            pl.BlockSpec((b_tile, 1, n_heads), lambda n: (n, 0, 0)),
        ),
        compiler_params=pltpu.CompilerParams(
            dimension_semantics=("parallel",),      # batch tiles split across TCs
            vmem_limit_bytes=32 * 1024 * 1024),     # above v5e's 16 MiB default
    )(x_prep, masks, w_all, b_all, w_heads, b_heads)
    # TODO(synk): for large H*W on v7x (64 MiB VMEM/TC), tile H into row blocks
    # with a 1-row halo (roll must not wrap within a tile) instead of whole
    # images per grid step, and accumulate the pooled sum across tiles.

    shared_nchw = shared_f.reshape(N, Cout, H, W)      # free reshapes (NCHW)
    private_nchw = private_f.reshape(N, Cout, H, W)
    heads = heads.reshape(N, n_heads)
    class_out = heads[:, :num_classes]
    domain_out = heads[:, num_classes:]
    return shared_nchw, private_nchw, class_out, domain_out


# ---------------------------------------------------------------------------
# Parameter init (deterministic, synthetic) + pure-JAX reference
# ---------------------------------------------------------------------------
def init_params(key, num_classes, in_ch, out_ch):
    ks = jax.random.split(key, 5)

    def conv_init(k):
        std = (2.0 / (in_ch * 9)) ** 0.5
        w = std * jax.random.normal(k, (3, 3, in_ch, out_ch), jnp.float32)
        b = jnp.zeros((out_ch,), jnp.float32)
        return (w, b)

    def linear_init(k, cout):
        std = (2.0 / out_ch) ** 0.5
        w = std * jax.random.normal(k, (out_ch, cout), jnp.float32)
        b = jnp.zeros((cout,), jnp.float32)
        return (w, b)

    return {
        "private_source": conv_init(ks[0]),
        "shared":         conv_init(ks[1]),
        "private_target": conv_init(ks[2]),
        "classifier":     linear_init(ks[3], num_classes),
        "domain":         linear_init(ks[4], 2),
    }


def _reference_forward(params, x_nchw, task_ind):
    """Pure-JAX reference (no Pallas), mirroring the kernel's numerics:
    bf16 conv operands with f32 accumulation, everything else f32."""
    w_sh, b_sh = params["shared"]
    w_pr, b_pr = (params["private_source"] if task_ind == 1
                  else params["private_target"])
    wc, bc = params["classifier"]
    wd, bd = params["domain"]

    def conv(x, w, b):
        y = lax.conv_general_dilated(
            x.astype(jnp.bfloat16), w.astype(jnp.bfloat16),
            window_strides=(1, 1), padding="SAME",
            dimension_numbers=("NCHW", "HWIO", "NCHW"),
            preferred_element_type=jnp.float32)
        y = y + b.reshape(1, -1, 1, 1)
        return jnp.where(y > 0, y, NEG_SLOPE * y)

    shared = conv(x_nchw, w_sh, b_sh)
    private = conv(x_nchw, w_pr, b_pr)
    pooled = shared.mean(axis=(2, 3))
    class_out = jnp.dot(pooled, wc, precision=lax.Precision.HIGHEST) + bc
    domain_out = jnp.dot(pooled, wd, precision=lax.Precision.HIGHEST) + bd
    return shared, private, class_out, domain_out


# ---------------------------------------------------------------------------
if __name__ == "__main__":
    key = jax.random.PRNGKey(0)
    k_x, k_p = jax.random.split(key)

    # Small shapes consistent with the module's forward.
    N, Cin, H, W = 2, 4, 16, 16
    Cout, num_classes = 8, 3
    # patch_size = 16 (stored in the PyTorch module, unused in forward)

    x = jax.random.normal(k_x, (N, Cin, H, W), jnp.float32)   # NCHW like PyTorch
    params = init_params(k_p, num_classes, Cin, Cout)

    for task_ind in (1, 2):
        outs = dsn_no_decoder_forward(params, x, task_ind=task_ind)
        jax.block_until_ready(outs)
        shared, private, class_out, domain_out = outs

        assert shared.shape == (N, Cout, H, W)
        assert private.shape == (N, Cout, H, W)
        assert class_out.shape == (N, num_classes)
        assert domain_out.shape == (N, 2)

        # Tolerance check vs pure-JAX reference (both sides use bf16 matmul
        # operands with f32 accumulation, so only accumulation order differs).
        refs = _reference_forward(params, x, task_ind)
        for got, ref in zip(outs, refs):
            err = float(jnp.max(jnp.abs(got - ref)))
            assert jnp.allclose(got, ref, rtol=5e-3, atol=5e-3), err

    print("KERNEL_OK")
</pallas_src>

<mosaic_0001>
module attributes {stable_mosaic.version = 11 : i64} {
  func.func @_dsn_fused_kernel(%arg0: i32, %arg1: memref<8x512xf32, #tpu.memory_space<vmem>>, %arg2: memref<9x512xf32, #tpu.memory_space<vmem>>, %arg3: memref<16x72xbf16, #tpu.memory_space<vmem>>, %arg4: memref<16x1xf32, #tpu.memory_space<vmem>>, %arg5: memref<8x5xf32, #tpu.memory_space<vmem>>, %arg6: memref<1x5xf32, #tpu.memory_space<vmem>>, %arg7: memref<2x8x256xf32, #tpu.memory_space<vmem>>, %arg8: memref<2x8x256xf32, #tpu.memory_space<vmem>>, %arg9: memref<2x1x5xf32, #tpu.memory_space<vmem>>) attributes {dimension_semantics = [#tpu.dimension_semantics<parallel>], iteration_bounds = array<i64: 1>, scalar_prefetch = 0 : i64, scratch_operands = 0 : i64, tpu.core_type = #tpu.core_type<tc>, window_params = [{transform_indices = @transform_0, window_bounds = array<i64: 8, 512>}, {pipeline_mode = #tpu.pipeline_mode<synchronous>, transform_indices = @transform_1, window_bounds = array<i64: 9, 512>}, {pipeline_mode = #tpu.pipeline_mode<synchronous>, transform_indices = @transform_2, window_bounds = array<i64: 16, 72>}, {pipeline_mode = #tpu.pipeline_mode<synchronous>, transform_indices = @transform_3, window_bounds = array<i64: 16, 1>}, {pipeline_mode = #tpu.pipeline_mode<synchronous>, transform_indices = @transform_4, window_bounds = array<i64: 8, 5>}, {pipeline_mode = #tpu.pipeline_mode<synchronous>, transform_indices = @transform_5, window_bounds = array<i64: 1, 5>}, {transform_indices = @transform_6, window_bounds = array<i64: 2, 8, 256>}, {transform_indices = @transform_7, window_bounds = array<i64: 2, 8, 256>}, {transform_indices = @transform_8, window_bounds = array<i64: 2, 1, 5>}]} {
    %c0 = arith.constant 0 : index
    %c0_0 = arith.constant 0 : index
    %0 = vector.load %arg1[%c0, %c0_0] : memref<8x512xf32, #tpu.memory_space<vmem>>, vector<8x512xf32>
    %c0_1 = arith.constant 0 : index
    %c0_2 = arith.constant 0 : index
    %1 = vector.load %arg2[%c0_1, %c0_2] : memref<9x512xf32, #tpu.memory_space<vmem>>, vector<9x512xf32>
    %c17_i32 = arith.constant 17 : i32
    %2 = tpu.dynamic_rotate %0 by %c17_i32 dim 1 : vector<8x512xf32>, i32 -> vector<8x512xf32>
    %3 = vector.extract_strided_slice %1 {offsets = [0, 0], sizes = [1, 512], strides = [1, 1]} : vector<9x512xf32> to vector<1x512xf32>
    %4 = vector.broadcast %3 : vector<1x512xf32> to vector<8x512xf32>
    %5 = arith.mulf %2, %4 : vector<8x512xf32>
    %c16_i32 = arith.constant 16 : i32
    %6 = tpu.dynamic_rotate %0 by %c16_i32 dim 1 : vector<8x512xf32>, i32 -> vector<8x512xf32>
    %7 = vector.extract_strided_slice %1 {offsets = [1, 0], sizes = [1, 512], strides = [1, 1]} : vector<9x512xf32> to vector<1x512xf32>
    %8 = vector.broadcast %7 : vector<1x512xf32> to vector<8x512xf32>
    %9 = arith.mulf %6, %8 : vector<8x512xf32>
    %c15_i32 = arith.constant 15 : i32
    %10 = tpu.dynamic_rotate %0 by %c15_i32 dim 1 : vector<8x512xf32>, i32 -> vector<8x512xf32>
    %11 = vector.extract_strided_slice %1 {offsets = [2, 0], sizes = [1, 512], strides = [1, 1]} : vector<9x512xf32> to vector<1x512xf32>
    %12 = vector.broadcast %11 : vector<1x512xf32> to vector<8x512xf32>
    %13 = arith.mulf %10, %12 : vector<8x512xf32>
    %c1_i32 = arith.constant 1 : i32
    %14 = tpu.dynamic_rotate %0 by %c1_i32 dim 1 : vector<8x512xf32>, i32 -> vector<8x512xf32>
    %15 = vector.extract_strided_slice %1 {offsets = [3, 0], sizes = [1, 512], strides = [1, 1]} : vector<9x512xf32> to vector<1x512xf32>
    %16 = vector.broadcast %15 : vector<1x512xf32> to vector<8x512xf32>
    %17 = arith.mulf %14, %16 : vector<8x512xf32>
    %c511_i32 = arith.constant 511 : i32
    %18 = tpu.dynamic_rotate %0 by %c511_i32 dim 1 : vector<8x512xf32>, i32 -> vector<8x512xf32>
    %19 = vector.extract_strided_slice %1 {offsets = [5, 0], sizes = [1, 512], strides = [1, 1]} : vector<9x512xf32> to vector<1x512xf32>
    %20 = vector.broadcast %19 : vector<1x512xf32> to vector<8x512xf32>
    %21 = arith.mulf %18, %20 : vector<8x512xf32>
    %c497_i32 = arith.constant 497 : i32
    %22 = tpu.dynamic_rotate %0 by %c497_i32 dim 1 : vector<8x512xf32>, i32 -> vector<8x512xf32>
    %23 = vector.extract_strided_slice %1 {offsets = [6, 0], sizes = [1, 512], strides = [1, 1]} : vector<9x512xf32> to vector<1x512xf32>
    %24 = vector.broadcast %23 : vector<1x512xf32> to vector<8x512xf32>
    %25 = arith.mulf %22, %24 : vector<8x512xf32>
    %c496_i32 = arith.constant 496 : i32
    %26 = tpu.dynamic_rotate %0 by %c496_i32 dim 1 : vector<8x512xf32>, i32 -> vector<8x512xf32>
    %27 = vector.extract_strided_slice %1 {offsets = [7, 0], sizes = [1, 512], strides = [1, 1]} : vector<9x512xf32> to vector<1x512xf32>
    %28 = vector.broadcast %27 : vector<1x512xf32> to vector<8x512xf32>
    %29 = arith.mulf %26, %28 : vector<8x512xf32>
    %c495_i32 = arith.constant 495 : i32
    %30 = tpu.dynamic_rotate %0 by %c495_i32 dim 1 : vector<8x512xf32>, i32 -> vector<8x512xf32>
    %31 = vector.extract_strided_slice %1 {offsets = [8, 0], sizes = [1, 512], strides = [1, 1]} : vector<9x512xf32> to vector<1x512xf32>
    %32 = vector.broadcast %31 : vector<1x512xf32> to vector<8x512xf32>
    %33 = arith.mulf %30, %32 : vector<8x512xf32>
    %34 = tpu.concatenate %5, %9, %13, %17, %0, %21, %25, %29, %33 in 0 : vector<8x512xf32>, vector<8x512xf32>, vector<8x512xf32>, vector<8x512xf32>, vector<8x512xf32>, vector<8x512xf32>, vector<8x512xf32>, vector<8x512xf32>, vector<8x512xf32> -> vector<72x512xf32>
    %c0_3 = arith.constant 0 : index
    %c0_4 = arith.constant 0 : index
    %35 = vector.load %arg3[%c0_3, %c0_4] : memref<16x72xbf16, #tpu.memory_space<vmem>>, vector<16x72xbf16>
    %36 = arith.truncf %34 : vector<72x512xf32> to vector<72x512xbf16>
    %cst = arith.constant dense<0.000000e+00> : vector<16x512xf32>
    %37 = tpu.matmul %35, %36, %cst {dimension_numbers = #tpu.dot_dimension_numbers<[1], [0], [0], [1], [0, 0, 1, 1], [], []>} : vector<16x72xbf16>, vector<72x512xbf16>, vector<16x512xf32> -> vector<16x512xf32>
    %c0_5 = arith.constant 0 : index
    %c0_6 = arith.constant 0 : index
    %38 = vector.load %arg4[%c0_5, %c0_6] : memref<16x1xf32, #tpu.memory_space<vmem>>, vector<16x1xf32>
    %39 = vector.broadcast %38 : vector<16x1xf32> to vector<16x512xf32>
    %40 = arith.addf %37, %39 : vector<16x512xf32>
    %cst_7 = arith.constant 0.000000e+00 : f32
    %41 = vector.broadcast %cst_7 : f32 to vector<16x512xf32>
    %42 = arith.cmpf ogt, %40, %41 : vector<16x512xf32>
    %cst_8 = arith.constant 0.00999999977 : f32
    %43 = vector.broadcast %cst_8 : f32 to vector<16x512xf32>
    %44 = arith.mulf %43, %40 : vector<16x512xf32>
    %45 = arith.select %42, %40, %44 : vector<16x512xi1>, vector<16x512xf32>
    %46 = vector.extract_strided_slice %45 {offsets = [0, 0], sizes = [16, 256], strides = [1, 1]} : vector<16x512xf32> to vector<16x256xf32>
    %47 = vector.extract_strided_slice %46 {offsets = [0, 0], sizes = [8, 256], strides = [1, 1]} : vector<16x256xf32> to vector<8x256xf32>
    %c0_9 = arith.constant 0 : index
    %c0_10 = arith.constant 0 : index
    %c0_11 = arith.constant 0 : index
    %48 = vector.load %arg7[%c0_9, %c0_10, %c0_11] : memref<2x8x256xf32, #tpu.memory_space<vmem>>, vector<1x8x256xf32>
    %49 = vector.shape_cast %48 : vector<1x8x256xf32> to vector<8x256xf32>
    %50 = vector.shape_cast %47 : vector<8x256xf32> to vector<1x8x256xf32>
    tpu.vector_store %arg7[%c0_9, %c0_10, %c0_11], %50 {strides = array<i32>} : memref<2x8x256xf32, #tpu.memory_space<vmem>>, vector<1x8x256xf32>,
    %51 = vector.extract_strided_slice %46 {offsets = [8, 0], sizes = [8, 256], strides = [1, 1]} : vector<16x256xf32> to vector<8x256xf32>
    %c0_12 = arith.constant 0 : index
    %c0_13 = arith.constant 0 : index
    %c0_14 = arith.constant 0 : index
    %52 = vector.load %arg8[%c0_12, %c0_13, %c0_14] : memref<2x8x256xf32, #tpu.memory_space<vmem>>, vector<1x8x256xf32>
    %53 = vector.shape_cast %52 : vector<1x8x256xf32> to vector<8x256xf32>
    %54 = vector.shape_cast %51 : vector<8x256xf32> to vector<1x8x256xf32>
    tpu.vector_store %arg8[%c0_12, %c0_13, %c0_14], %54 {strides = array<i32>} : memref<2x8x256xf32, #tpu.memory_space<vmem>>, vector<1x8x256xf32>,
    %cst_15 = arith.constant dense<0.000000e+00> : vector<8xf32>
    %55 = vector.multi_reduction <add>, %47, %cst_15 [1] : vector<8x256xf32> to vector<8xf32>
    %56 = vector.shape_cast %55 : vector<8xf32> to vector<8x1xf32>
    %cst_16 = arith.constant 3.906250e-03 : f32
    %57 = vector.broadcast %cst_16 : f32 to vector<8x1xf32>
    %58 = arith.mulf %56, %57 : vector<8x1xf32>
    %c0_17 = arith.constant 0 : index
    %c0_18 = arith.constant 0 : index
    %59 = vector.load %arg5[%c0_17, %c0_18] : memref<8x5xf32, #tpu.memory_space<vmem>>, vector<8x5xf32>
    %60 = vector.broadcast %58 : vector<8x1xf32> to vector<8x5xf32>
    %61 = arith.mulf %60, %59 : vector<8x5xf32>
    %cst_19 = arith.constant dense<0.000000e+00> : vector<5xf32>
    %62 = vector.multi_reduction <add>, %61, %cst_19 [0] : vector<8x5xf32> to vector<5xf32>
    %63 = vector.shape_cast %62 : vector<5xf32> to vector<1x5xf32>
    %c0_20 = arith.constant 0 : index
    %c0_21 = arith.constant 0 : index
    %64 = vector.load %arg6[%c0_20, %c0_21] : memref<1x5xf32, #tpu.memory_space<vmem>>, vector<1x5xf32>
    %65 = arith.addf %63, %64 : vector<1x5xf32>
    %c0_22 = arith.constant 0 : index
    %c0_23 = arith.constant 0 : index
    %c0_24 = arith.constant 0 : index
    %66 = vector.load %arg9[%c0_22, %c0_23, %c0_24] : memref<2x1x5xf32, #tpu.memory_space<vmem>>, vector<1x1x5xf32>
    %67 = vector.shape_cast %66 : vector<1x1x5xf32> to vector<1x5xf32>
    %68 = vector.shape_cast %65 : vector<1x5xf32> to vector<1x1x5xf32>
    tpu.vector_store %arg9[%c0_22, %c0_23, %c0_24], %68 {strides = array<i32>} : memref<2x1x5xf32, #tpu.memory_space<vmem>>, vector<1x1x5xf32>,
    %69 = vector.extract_strided_slice %45 {offsets = [0, 256], sizes = [16, 256], strides = [1, 1]} : vector<16x512xf32> to vector<16x256xf32>
    %70 = vector.extract_strided_slice %69 {offsets = [0, 0], sizes = [8, 256], strides = [1, 1]} : vector<16x256xf32> to vector<8x256xf32>
    %c1 = arith.constant 1 : index
    %c0_25 = arith.constant 0 : index
    %c0_26 = arith.constant 0 : index
    %71 = vector.load %arg7[%c1, %c0_25, %c0_26] : memref<2x8x256xf32, #tpu.memory_space<vmem>>, vector<1x8x256xf32>
    %72 = vector.shape_cast %71 : vector<1x8x256xf32> to vector<8x256xf32>
    %73 = vector.shape_cast %70 : vector<8x256xf32> to vector<1x8x256xf32>
    tpu.vector_store %arg7[%c1, %c0_25, %c0_26], %73 {strides = array<i32>} : memref<2x8x256xf32, #tpu.memory_space<vmem>>, vector<1x8x256xf32>,
    %74 = vector.extract_strided_slice %69 {offsets = [8, 0], sizes = [8, 256], strides = [1, 1]} : vector<16x256xf32> to vector<8x256xf32>
    %c1_27 = arith.constant 1 : index
    %c0_28 = arith.constant 0 : index
    %c0_29 = arith.constant 0 : index
    %75 = vector.load %arg8[%c1_27, %c0_28, %c0_29] : memref<2x8x256xf32, #tpu.memory_space<vmem>>, vector<1x8x256xf32>
    %76 = vector.shape_cast %75 : vector<1x8x256xf32> to vector<8x256xf32>
    %77 = vector.shape_cast %74 : vector<8x256xf32> to vector<1x8x256xf32>
    tpu.vector_store %arg8[%c1_27, %c0_28, %c0_29], %77 {strides = array<i32>} : memref<2x8x256xf32, #tpu.memory_space<vmem>>, vector<1x8x256xf32>,
    %cst_30 = arith.constant dense<0.000000e+00> : vector<8xf32>
    %78 = vector.multi_reduction <add>, %70, %cst_30 [1] : vector<8x256xf32> to vector<8xf32>
    %79 = vector.shape_cast %78 : vector<8xf32> to vector<8x1xf32>
    %cst_31 = arith.constant 3.906250e-03 : f32
    %80 = vector.broadcast %cst_31 : f32 to vector<8x1xf32>
    %81 = arith.mulf %79, %80 : vector<8x1xf32>
    %c0_32 = arith.constant 0 : index
    %c0_33 = arith.constant 0 : index
    %82 = vector.load %arg5[%c0_32, %c0_33] : memref<8x5xf32, #tpu.memory_space<vmem>>, vector<8x5xf32>
    %83 = vector.broadcast %81 : vector<8x1xf32> to vector<8x5xf32>
    %84 = arith.mulf %83, %82 : vector<8x5xf32>
    %cst_34 = arith.constant dense<0.000000e+00> : vector<5xf32>
    %85 = vector.multi_reduction <add>, %84, %cst_34 [0] : vector<8x5xf32> to vector<5xf32>
    %86 = vector.shape_cast %85 : vector<5xf32> to vector<1x5xf32>
    %c0_35 = arith.constant 0 : index
    %c0_36 = arith.constant 0 : index
    %87 = vector.load %arg6[%c0_35, %c0_36] : memref<1x5xf32, #tpu.memory_space<vmem>>, vector<1x5xf32>
    %88 = arith.addf %86, %87 : vector<1x5xf32>
    %c1_37 = arith.constant 1 : index
    %c0_38 = arith.constant 0 : index
    %c0_39 = arith.constant 0 : index
    %89 = vector.load %arg9[%c1_37, %c0_38, %c0_39] : memref<2x1x5xf32, #tpu.memory_space<vmem>>, vector<1x1x5xf32>
    %90 = vector.shape_cast %89 : vector<1x1x5xf32> to vector<1x5xf32>
    %91 = vector.shape_cast %88 : vector<1x5xf32> to vector<1x1x5xf32>
    tpu.vector_store %arg9[%c1_37, %c0_38, %c0_39], %91 {strides = array<i32>} : memref<2x1x5xf32, #tpu.memory_space<vmem>>, vector<1x1x5xf32>,
    return
  }
  func.func @transform_0(%arg0: i32) -> (i32, i32) {
    %c0_i32 = arith.constant 0 : i32
    %c0_i32_0 = arith.constant 0 : i32
    return %c0_i32, %arg0 : i32, i32
  }
  func.func @transform_1(%arg0: i32) -> (i32, i32) {
    %c0_i32 = arith.constant 0 : i32
    %c0_i32_0 = arith.constant 0 : i32
    %c0_i32_1 = arith.constant 0 : i32
    return %c0_i32, %c0_i32_0 : i32, i32
  }
  func.func @transform_2(%arg0: i32) -> (i32, i32) {
    %c0_i32 = arith.constant 0 : i32
    %c0_i32_0 = arith.constant 0 : i32
    %c0_i32_1 = arith.constant 0 : i32
    return %c0_i32, %c0_i32_0 : i32, i32
  }
  func.func @transform_3(%arg0: i32) -> (i32, i32) {
    %c0_i32 = arith.constant 0 : i32
    %c0_i32_0 = arith.constant 0 : i32
    %c0_i32_1 = arith.constant 0 : i32
    return %c0_i32, %c0_i32_0 : i32, i32
  }
  func.func @transform_4(%arg0: i32) -> (i32, i32) {
    %c0_i32 = arith.constant 0 : i32
    %c0_i32_0 = arith.constant 0 : i32
    %c0_i32_1 = arith.constant 0 : i32
    return %c0_i32, %c0_i32_0 : i32, i32
  }
  func.func @transform_5(%arg0: i32) -> (i32, i32) {
    %c0_i32 = arith.constant 0 : i32
    %c0_i32_0 = arith.constant 0 : i32
    %c0_i32_1 = arith.constant 0 : i32
    return %c0_i32, %c0_i32_0 : i32, i32
  }
  func.func @transform_6(%arg0: i32) -> (i32, i32, i32) {
    %c0_i32 = arith.constant 0 : i32
    %c0_i32_0 = arith.constant 0 : i32
    %c0_i32_1 = arith.constant 0 : i32
    return %arg0, %c0_i32, %c0_i32_0 : i32, i32, i32
  }
  func.func @transform_7(%arg0: i32) -> (i32, i32, i32) {
    %c0_i32 = arith.constant 0 : i32
    %c0_i32_0 = arith.constant 0 : i32
    %c0_i32_1 = arith.constant 0 : i32
    return %arg0, %c0_i32, %c0_i32_0 : i32, i32, i32
  }
  func.func @transform_8(%arg0: i32) -> (i32, i32, i32) {
    %c0_i32 = arith.constant 0 : i32
    %c0_i32_0 = arith.constant 0 : i32
    %c0_i32_1 = arith.constant 0 : i32
    return %arg0, %c0_i32, %c0_i32_0 : i32, i32, i32
  }
}

</mosaic_0001>

<llo_original>
// kernel: dsn_no_decoder_forward.1
$region0: #{dsn_no_decoder_forward.1}
  #allocation0 [shape = 'u32[]', space=smem, size = 0x4, offset = 0x4, fixed_abs, tag = 'smem constant byte address 0x4 - core index']
  #allocation1 [shape = 'u32[144,128]{1,0:T(1,128)}', space=vmem, size = 0x12000, scoped, tag = 'internal scratch']
  %s0 = inlined_call_operand.vmem [shape: f32[8,512], index: 0, kind: input, shape index: {}]
  %s1 = inlined_call_operand.vmem [shape: f32[9,512], index: 1, kind: input, shape index: {}]
  %s2 = inlined_call_operand.vmem [shape: bf16[16,72], index: 2, kind: input, shape index: {}]
  %s3 = inlined_call_operand.vmem [shape: f32[16,1], index: 3, kind: input, shape index: {}]
  %s4 = inlined_call_operand.vmem [shape: f32[8,5], index: 4, kind: input, shape index: {}]
  %s5 = inlined_call_operand.vmem [shape: f32[1,5], index: 5, kind: input, shape index: {}]
  %s6 = inlined_call_operand.vmem [shape: f32[2,8,256], index: 6, kind: output, shape index: {0}]
  %s7 = inlined_call_operand.vmem [shape: f32[2,8,256], index: 7, kind: output, shape index: {1}]
  %s8 = inlined_call_operand.vmem [shape: f32[2,1,5], index: 8, kind: output, shape index: {2}]
  %9 = xla_tuple %s6, %s7, %s8
  %s10 = sld [smem:[#allocation0]]
  $region50: #{dsn_no_decoder_forward.1} parent=0
    _
  %s12 = ssub.s32 1, %s10
  %s13 = scalar_select 0, %s12, %s10
  // Predicated region
  $region2: #{dsn_no_decoder_forward.1} parent=0 // pred_check
    _
  $region3: #{dsn_no_decoder_forward.1} parent=0 // pred_check_branch
    %15 = sbr.rel (0) target = $region5
  $region4: #{dsn_no_decoder_forward.1} parent=0 // pred_region
    _
  $region5: #{dsn_no_decoder_forward.1} parent=0 // pred_fallthru
    _
  // Predicated region
  $region6: #{dsn_no_decoder_forward.1} parent=0 // pred_check
    _
  $region7: #{dsn_no_decoder_forward.1} parent=0 // pred_check_branch
    %17 = sbr.rel (0) target = $region9
  $region8: #{dsn_no_decoder_forward.1} parent=0 // pred_region
    _
  $region9: #{dsn_no_decoder_forward.1} parent=0 // pred_fallthru
    _
  // Predicated region
  $region10: #{dsn_no_decoder_forward.1} parent=0 // pred_check
    _
  $region11: #{dsn_no_decoder_forward.1} parent=0 // pred_check_branch
    %19 = sbr.rel (0) target = $region13
  $region12: #{dsn_no_decoder_forward.1} parent=0 // pred_region
    _
  $region13: #{dsn_no_decoder_forward.1} parent=0 // pred_fallthru
    _
  // Predicated region
  $region14: #{dsn_no_decoder_forward.1} parent=0 // pred_check
    _
  $region15: #{dsn_no_decoder_forward.1} parent=0 // pred_check_branch
    %21 = sbr.rel (0) target = $region17
  $region16: #{dsn_no_decoder_forward.1} parent=0 // pred_region
    _
  $region17: #{dsn_no_decoder_forward.1} parent=0 // pred_fallthru
    _
  // Predicated region
  $region18: #{dsn_no_decoder_forward.1} parent=0 // pred_check
    _
  $region19: #{dsn_no_decoder_forward.1} parent=0 // pred_check_branch
    %23 = sbr.rel (0) target = $region21
  $region20: #{dsn_no_decoder_forward.1} parent=0 // pred_region
    _
  $region21: #{dsn_no_decoder_forward.1} parent=0 // pred_fallthru
    _
  // Predicated region
  $region22: #{dsn_no_decoder_forward.1} parent=0 // pred_check
    _
  $region23: #{dsn_no_decoder_forward.1} parent=0 // pred_check_branch
    %25 = sbr.rel (0) target = $region25
  $region24: #{dsn_no_decoder_forward.1} parent=0 // pred_region
    _
  $region25: #{dsn_no_decoder_forward.1} parent=0 // pred_fallthru
    _
  %v27 = vld [vmem:[%s0] sm:$0xff]
  %v28 = vld [vmem:[%s0 + $0x8] sm:$0xff]
  %v29 = vld [vmem:[%s0 + $0x10] sm:$0xff]
  %v30 = vld [vmem:[%s0 + $0x18] sm:$0xff]
  %v31 = vld [vmem:[%s1] sm:$0xff]
  %v32 = vld [vmem:[%s1 + $0x8] sm:$0xff]
  %v33 = vld [vmem:[%s1 + $0x10] sm:$0xff]
  %v34 = vld [vmem:[%s1 + $0x18] sm:$0xff]
  %v35 = vld [vmem:[%s1 + $0x20] sm:$0x1]
  %v36 = vld [vmem:[%s1 + $0x28] sm:$0x1]
  %v37 = vld [vmem:[%s1 + $0x30] sm:$0x1]
  %v38 = vld [vmem:[%s1 + $0x38] sm:$0x1]
  %39 = vrot.lane.b32.xlu0 %v27, 17
  %v40 = vpop.permute.xlu0 %39
  %41 = vrot.lane.b32.xlu0 %v28, 17
  %v42 = vpop.permute.xlu0 %41
  %43 = vrot.lane.b32.xlu0 %v29, 17
  %v44 = vpop.permute.xlu0 %43
  %45 = vrot.lane.b32.xlu0 %v30, 17
  %v46 = vpop.permute.xlu0 %45
  %v47 = vlaneseq
  %v48 = vand.u32 %v47, 127
  %vm49 = vcmp.lt.s32.totalorder %v48, 17
  %v50 = vsel %vm49, %v44, %v46
  %v51 = vsel %vm49, %v42, %v44
  %v52 = vsel %vm49, %v40, %v42
  %v53 = vsel %vm49, %v46, %v40
  %v54 = vlaneseq
  %v55 = vshrl.u32 %v54, 7
  %v56 = vsub.s32 0, %v55
  %v57 = vrot.slane %v31, %v56
  %v58 = vlaneseq
  %v59 = vshrl.u32 %v58, 7
  %v60 = vsub.s32 0, %v59
  %v61 = vrot.slane %v32, %v60
  %v62 = vlaneseq
  %v63 = vshrl.u32 %v62, 7
  %v64 = vsub.s32 0, %v63
  %v65 = vrot.slane %v33, %v64
  %v66 = vlaneseq
  %v67 = vshrl.u32 %v66, 7
  %v68 = vsub.s32 0, %v67
  %v69 = vrot.slane %v34, %v68
  %v70 = vmul.f32 %v53, %v57
  %v71 = vmul.f32 %v52, %v61
  %v72 = vmul.f32 %v51, %v65
  %v73 = vmul.f32 %v50, %v69
  %74 = vrot.lane.b32.xlu0 %v27, 16
  %v75 = vpop.permute.xlu0 %74
  %76 = vrot.lane.b32.xlu0 %v28, 16
  %v77 = vpop.permute.xlu0 %76
  %78 = vrot.lane.b32.xlu0 %v29, 16
  %v79 = vpop.permute.xlu0 %78
  %80 = vrot.lane.b32.xlu0 %v30, 16
  %v81 = vpop.permute.xlu0 %80
  %vm82 = vcmp.lt.s32.totalorder %v48, 16
  %v83 = vsel %vm82, %v79, %v81
  %v84 = vsel %vm82, %v77, %v79
  %v85 = vsel %vm82, %v75, %v77
  %v86 = vsel %vm82, %v81, %v75
  %v87 = vlaneseq
  %v88 = vshrl.u32 %v87, 7
  %v89 = vsub.s32 1, %v88
  %v90 = vrot.slane %v31, %v89
  %v91 = vlaneseq
  %v92 = vshrl.u32 %v91, 7
  %v93 = vsub.s32 1, %v92
  %v94 = vrot.slane %v32, %v93
  %v95 = vlaneseq
  %v96 = vshrl.u32 %v95, 7
  %v97 = vsub.s32 1, %v96
  %v98 = vrot.slane %v33, %v97
  %v99 = vlaneseq
  %v100 = vshrl.u32 %v99, 7
  %v101 = vsub.s32 1, %v100
  %v102 = vrot.slane %v34, %v101
  %v103 = vmul.f32 %v86, %v90
  %v104 = vmul.f32 %v85, %v94
  %v105 = vmul.f32 %v84, %v98
  %v106 = vmul.f32 %v83, %v102
  %107 = vrot.lane.b32.xlu0 %v27, 15
  %v108 = vpop.permute.xlu0 %107
  %109 = vrot.lane.b32.xlu0 %v28, 15
  %v110 = vpop.permute.xlu0 %109
  %111 = vrot.lane.b32.xlu0 %v29, 15
  %v112 = vpop.permute.xlu0 %111
  %113 = vrot.lane.b32.xlu0 %v30, 15
  %v114 = vpop.permute.xlu0 %113
  %vm115 = vcmp.lt.s32.totalorder %v48, 15
  %v116 = vsel %vm115, %v112, %v114
  %v117 = vsel %vm115, %v110, %v112
  %v118 = vsel %vm115, %v108, %v110
  %v119 = vsel %vm115, %v114, %v108
  %v120 = vlaneseq
  %v121 = vshrl.u32 %v120, 7
  %v122 = vsub.s32 2, %v121
  %v123 = vrot.slane %v31, %v122
  %v124 = vlaneseq
  %v125 = vshrl.u32 %v124, 7
  %v126 = vsub.s32 2, %v125
  %v127 = vrot.slane %v32, %v126
  %v128 = vlaneseq
  %v129 = vshrl.u32 %v128, 7
  %v130 = vsub.s32 2, %v129
  %v131 = vrot.slane %v33, %v130
  %v132 = vlaneseq
  %v133 = vshrl.u32 %v132, 7
  %v134 = vsub.s32 2, %v133
  %v135 = vrot.slane %v34, %v134
  %v136 = vmul.f32 %v119, %v123
  %v137 = vmul.f32 %v118, %v127
  %v138 = vmul.f32 %v117, %v131
  %v139 = vmul.f32 %v116, %v135
  %140 = vrot.lane.b32.xlu0 %v27, 1
  %v141 = vpop.permute.xlu0 %140
  %142 = vrot.lane.b32.xlu0 %v28, 1
  %v143 = vpop.permute.xlu0 %142
  %144 = vrot.lane.b32.xlu0 %v29, 1
  %v145 = vpop.permute.xlu0 %144
  %146 = vrot.lane.b32.xlu0 %v30, 1
  %v147 = vpop.permute.xlu0 %146
  %vm148 = vcmp.lt.s32.totalorder %v48, 1
  %v149 = vsel %vm148, %v145, %v147
  %v150 = vsel %vm148, %v143, %v145
  %v151 = vsel %vm148, %v141, %v143
  %v152 = vsel %vm148, %v147, %v141
  %v153 = vlaneseq
  %v154 = vshrl.u32 %v153, 7
  %v155 = vsub.s32 3, %v154
  %v156 = vrot.slane %v31, %v155
  %v157 = vlaneseq
  %v158 = vshrl.u32 %v157, 7
  %v159 = vsub.s32 3, %v158
  %v160 = vrot.slane %v32, %v159
  %v161 = vlaneseq
  %v162 = vshrl.u32 %v161, 7
  %v163 = vsub.s32 3, %v162
  %v164 = vrot.slane %v33, %v163
  %v165 = vlaneseq
  %v166 = vshrl.u32 %v165, 7
  %v167 = vsub.s32 3, %v166
  %v168 = vrot.slane %v34, %v167
  %v169 = vmul.f32 %v152, %v156
  %v170 = vmul.f32 %v151, %v160
  %v171 = vmul.f32 %v150, %v164
  %v172 = vmul.f32 %v149, %v168
  %173 = vrot.lane.b32.xlu0 %v27, 127
  %v174 = vpop.permute.xlu0 %173
  %175 = vrot.lane.b32.xlu0 %v28, 127
  %v176 = vpop.permute.xlu0 %175
  %177 = vrot.lane.b32.xlu0 %v29, 127
  %v178 = vpop.permute.xlu0 %177
  %179 = vrot.lane.b32.xlu0 %v30, 127
  %v180 = vpop.permute.xlu0 %179
  %vm181 = vcmp.lt.s32.totalorder %v48, 127
  %v182 = vsel %vm181, %v178, %v180
  %v183 = vsel %vm181, %v176, %v178
  %v184 = vsel %vm181, %v174, %v176
  %v185 = vsel %vm181, %v180, %v174
  %v186 = vlaneseq
  %v187 = vshrl.u32 %v186, 7
  %v188 = vsub.s32 5, %v187
  %v189 = vrot.slane %v31, %v188
  %v190 = vlaneseq
  %v191 = vshrl.u32 %v190, 7
  %v192 = vsub.s32 5, %v191
  %v193 = vrot.slane %v32, %v192
  %v194 = vlaneseq
  %v195 = vshrl.u32 %v194, 7
  %v196 = vsub.s32 5, %v195
  %v197 = vrot.slane %v33, %v196
  %v198 = vlaneseq
  %v199 = vshrl.u32 %v198, 7
  %v200 = vsub.s32 5, %v199
  %v201 = vrot.slane %v34, %v200
  %v202 = vmul.f32 %v184, %v189
  %v203 = vmul.f32 %v183, %v193
  %v204 = vmul.f32 %v182, %v197
  %v205 = vmul.f32 %v185, %v201
  %206 = vrot.lane.b32.xlu0 %v27, 113
  %v207 = vpop.permute.xlu0 %206
  %208 = vrot.lane.b32.xlu0 %v28, 113
  %v209 = vpop.permute.xlu0 %208
  %210 = vrot.lane.b32.xlu0 %v29, 113
  %v211 = vpop.permute.xlu0 %210
  %212 = vrot.lane.b32.xlu0 %v30, 113
  %v213 = vpop.permute.xlu0 %212
  %vm214 = vcmp.lt.s32.totalorder %v48, 113
  %v215 = vsel %vm214, %v211, %v213
  %v216 = vsel %vm214, %v209, %v211
  %v217 = vsel %vm214, %v207, %v209
  %v218 = vsel %vm214, %v213, %v207
  %v219 = vlaneseq
  %v220 = vshrl.u32 %v219, 7
  %v221 = vsub.s32 6, %v220
  %v222 = vrot.slane %v31, %v221
  %v223 = vlaneseq
  %v224 = vshrl.u32 %v223, 7
  %v225 = vsub.s32 6, %v224
  %v226 = vrot.slane %v32, %v225
  %v227 = vlaneseq
  %v228 = vshrl.u32 %v227, 7
  %v229 = vsub.s32 6, %v228
  %v230 = vrot.slane %v33, %v229
  %v231 = vlaneseq
  %v232 = vshrl.u32 %v231, 7
  %v233 = vsub.s32 6, %v232
  %v234 = vrot.slane %v34, %v233
  %v235 = vmul.f32 %v217, %v222
  %v236 = vmul.f32 %v216, %v226
  %v237 = vmul.f32 %v215, %v230
  %v238 = vmul.f32 %v218, %v234
  %239 = vrot.lane.b32.xlu0 %v27, 112
  %v240 = vpop.permute.xlu0 %239
  %241 = vrot.lane.b32.xlu0 %v28, 112
  %v242 = vpop.permute.xlu0 %241
  %243 = vrot.lane.b32.xlu0 %v29, 112
  %v244 = vpop.permute.xlu0 %243
  %245 = vrot.lane.b32.xlu0 %v30, 112
  %v246 = vpop.permute.xlu0 %245
  %vm247 = vcmp.lt.s32.totalorder %v48, 112
  %v248 = vsel %vm247, %v244, %v246
  %v249 = vsel %vm247, %v242, %v244
  %v250 = vsel %vm247, %v240, %v242
  %v251 = vsel %vm247, %v246, %v240
  %v252 = vlaneseq
  %v253 = vshrl.u32 %v252, 7
  %v254 = vsub.s32 7, %v253
  %v255 = vrot.slane %v31, %v254
  %v256 = vlaneseq
  %v257 = vshrl.u32 %v256, 7
  %v258 = vsub.s32 7, %v257
  %v259 = vrot.slane %v32, %v258
  %v260 = vlaneseq
  %v261 = vshrl.u32 %v260, 7
  %v262 = vsub.s32 7, %v261
  %v263 = vrot.slane %v33, %v262
  %v264 = vlaneseq
  %v265 = vshrl.u32 %v264, 7
  %v266 = vsub.s32 7, %v265
  %v267 = vrot.slane %v34, %v266
  %v268 = vmul.f32 %v250, %v255
  %v269 = vmul.f32 %v249, %v259
  %v270 = vmul.f32 %v248, %v263
  %v271 = vmul.f32 %v251, %v267
  %272 = vrot.lane.b32.xlu0 %v27, 111
  %v273 = vpop.permute.xlu0 %272
  %274 = vrot.lane.b32.xlu0 %v28, 111
  %v275 = vpop.permute.xlu0 %274
  %276 = vrot.lane.b32.xlu0 %v29, 111
  %v277 = vpop.permute.xlu0 %276
  %278 = vrot.lane.b32.xlu0 %v30, 111
  %v279 = vpop.permute.xlu0 %278
  %vm280 = vcmp.lt.s32.totalorder %v48, 111
  %v281 = vsel %vm280, %v277, %v279
  %v282 = vsel %vm280, %v275, %v277
  %v283 = vsel %vm280, %v273, %v275
  %v284 = vsel %vm280, %v279, %v273
  %v285 = vlaneseq
  %v286 = vshrl.u32 %v285, 7
  %v287 = vsub.s32 0, %v286
  %v288 = vrot.slane %v35, %v287
  %v289 = vlaneseq
  %v290 = vshrl.u32 %v289, 7
  %v291 = vsub.s32 0, %v290
  %v292 = vrot.slane %v36, %v291
  %v293 = vlaneseq
  %v294 = vshrl.u32 %v293, 7
  %v295 = vsub.s32 0, %v294
  %v296 = vrot.slane %v37, %v295
  %v297 = vlaneseq
  %v298 = vshrl.u32 %v297, 7
  %v299 = vsub.s32 0, %v298
  %v300 = vrot.slane %v38, %v299
  %v301 = vmul.f32 %v283, %v288
  %v302 = vmul.f32 %v282, %v292
  %v303 = vmul.f32 %v281, %v296
  %v304 = vmul.f32 %v284, %v300
  %v305 = vld [vmem:[%s2] sm:$0xf]
  %v306 = vld [vmem:[%s2 + $0x4] sm:$0xf]
  %v307 = vpack.c.bf16 %v103, %v70
  %v308 = vpack.c.bf16 %v104, %v71
  %v309 = vpack.c.bf16 %v105, %v72
  %v310 = vpack.c.bf16 %v106, %v73
  %v311 = vpack.c.bf16 %v169, %v136
  %v312 = vpack.c.bf16 %v170, %v137
  %v313 = vpack.c.bf16 %v171, %v138
  %v314 = vpack.c.bf16 %v172, %v139
  %v315 = vpack.c.bf16 %v202, %v27
  %v316 = vpack.c.bf16 %v203, %v28
  %v317 = vpack.c.bf16 %v204, %v29
  %v318 = vpack.c.bf16 %v205, %v30
  %v319 = vpack.c.bf16 %v268, %v235
  %v320 = vpack.c.bf16 %v269, %v236
  %v321 = vpack.c.bf16 %v270, %v237
  %v322 = vpack.c.bf16 %v271, %v238
  %v323 = vpack.c.bf16 %v301, %v301
  %v324 = vpack.c.bf16 %v302, %v302
  %v325 = vpack.c.bf16 %v303, %v303
  %v326 = vpack.c.bf16 %v304, %v304
  %v327 = vld [vmem:[%s3] sm:$0xff]
  %v328 = vld [vmem:[%s3 + $0x8] sm:$0xff]
  %330 = vset.pattern.permute.xlu0 0
  %331 = vperm.xlu0 %330, %v327
  %v332 = vpop.permute.xlu0 %331
  %335 = vset.pattern.permute.xlu0 0
  %336 = vperm.xlu0 %335, %v328
  %v337 = vpop.permute.xlu0 %336
  %v341 = vunpack.c.l.b16 %v305
  %v342 = vunpack.c.l.b16 %v306
  %v343 = vpack.c.b16 %v342, %v341
  %vm344 = vcmask 588800
  %v346 = vsel %vm344, %v343, 0
  %vm348 = vcmask 1043456
  %v350 = vsel %vm348, %v323, 0
  %v353 = vsel %vm348, %v324, 0
  %v356 = vsel %vm348, %v325, 0
  %v359 = vsel %vm348, %v326, 0
  %361 = vmatprep.subr.bf16.mxu0 %v308
  %362 = vmatpush1.bf16.msra.mxu0 %v307
  %363 = vmatprep.subr.bf16.mxu0 %v312
  %364 = vmatpush1.bf16.msra.mxu0 %v311
  %365 = vmatprep.subr.bf16.mxu0 %v316
  %366 = vmatpush1.bf16.msra.mxu0 %v315
  %367 = vmatprep.subr.bf16.mxu0 %v320
  %368 = vmatpush1.bf16.msra.mxu0 %v319
  %369 = vmatprep.subr.bf16.mxu0 %v353
  %370 = vmatpush1.bf16.msra.mxu0 %v350
  %371 = vmatprep.subr.bf16.mxu0 0
  %372 = vmatpush1.bf16.msra.mxu0 0
  %373 = vmatprep.subr.bf16.mxu0 0
  %374 = vmatpush1.bf16.msra.mxu0 0
  %375 = vmatprep.subr.bf16.mxu0 0
  %376 = vmatpush1.bf16.msra.mxu0 0
  %377 = vmatprep.subr.bf16.mxu0 0
  %378 = vmatpush1.bf16.msra.mxu0 0
  %379 = vmatprep.subr.bf16.mxu0 0
  %380 = vmatpush1.bf16.msra.mxu0 0
  %381 = vmatprep.subr.bf16.mxu0 0
  %382 = vmatpush1.bf16.msra.mxu0 0
  %383 = vmatprep.subr.bf16.mxu0 0
  %384 = vmatpush1.bf16.msra.mxu0 0
  %385 = vmatprep.subr.bf16.mxu0 0
  %386 = vmatpush1.bf16.msra.mxu0 0
  %387 = vmatprep.subr.bf16.mxu0 0
  %388 = vmatpush1.bf16.msra.mxu0 0
  %389 = vmatprep.subr.bf16.mxu0 0
  %390 = vmatpush1.bf16.msra.mxu0 0
  %391 = vmatprep.subr.bf16.mxu0 0
  %392 = vmatpush1.bf16.msra.mxu0 0
  %393 = vmatprep.mubr.bf16.mxu0 0
  %394 = vmatmul.mubr.bf16.gmra.mrb[0].mxu0 %v346
  %v395 = vpop.f32.mrb[0].mxu0
  %v396 = vadd.f32 %v332, %v395
  %v397 = vpop.f32.mrb[0].mxu0
  %v398 = vadd.f32 %v332, %v397
  %v399 = vpop.f32.mrb[0].mxu0
  %v400 = vadd.f32 %v337, %v399
  %v401 = vpop.f32.mrb[0].mxu0
  %v402 = vadd.f32 %v337, %v401
  %403 = vdwg.mxu0
  %404 = vmatprep.subr.bf16.mxu0 %v310
  %405 = vmatpush1.bf16.msra.mxu0 %v309
  %406 = vmatprep.subr.bf16.mxu0 %v314
  %407 = vmatpush1.bf16.msra.mxu0 %v313
  %408 = vmatprep.subr.bf16.mxu0 %v318
  %409 = vmatpush1.bf16.msra.mxu0 %v317
  %410 = vmatprep.subr.bf16.mxu0 %v322
  %411 = vmatpush1.bf16.msra.mxu0 %v321
  %412 = vmatprep.subr.bf16.mxu0 %v359
  %413 = vmatpush1.bf16.msra.mxu0 %v356
  %414 = vmatprep.subr.bf16.mxu0 0
  %415 = vmatpush1.bf16.msra.mxu0 0
  %416 = vmatprep.subr.bf16.mxu0 0
  %417 = vmatpush1.bf16.msra.mxu0 0
  %418 = vmatprep.subr.bf16.mxu0 0
  %419 = vmatpush1.bf16.msra.mxu0 0
  %420 = vmatprep.subr.bf16.mxu0 0
  %421 = vmatpush1.bf16.msra.mxu0 0
  %422 = vmatprep.subr.bf16.mxu0 0
  %423 = vmatpush1.bf16.msra.mxu0 0
  %424 = vmatprep.subr.bf16.mxu0 0
  %425 = vmatpush1.bf16.msra.mxu0 0
  %426 = vmatprep.subr.bf16.mxu0 0
  %427 = vmatpush1.bf16.msra.mxu0 0
  %428 = vmatprep.subr.bf16.mxu0 0
  %429 = vmatpush1.bf16.msra.mxu0 0
  %430 = vmatprep.subr.bf16.mxu0 0
  %431 = vmatpush1.bf16.msra.mxu0 0
  %432 = vmatprep.subr.bf16.mxu0 0
  %433 = vmatpush1.bf16.msra.mxu0 0
  %434 = vmatprep.subr.bf16.mxu0 0
  %435 = vmatpush1.bf16.msra.mxu0 0
  %436 = vmatprep.mubr.bf16.mxu0 0
  %437 = vmatmul.mubr.bf16.gmra.mrb[0].mxu0 %v346
  %v438 = vpop.f32.mrb[0].mxu0
  %v439 = vadd.f32 %v332, %v438
  %v440 = vpop.f32.mrb[0].mxu0
  %v441 = vadd.f32 %v332, %v440
  %v442 = vpop.f32.mrb[0].mxu0
  %v443 = vadd.f32 %v337, %v442
  %v444 = vpop.f32.mrb[0].mxu0
  %v445 = vadd.f32 %v337, %v444
  %446 = vdwg.mxu0
  %vm447 = vcmp.gt.f32.partialorder %v396, 0.0
  %vm448 = vcmp.gt.f32.partialorder %v398, 0.0
  %vm449 = vcmp.gt.f32.partialorder %v439, 0.0
  %vm450 = vcmp.gt.f32.partialorder %v441, 0.0
  %vm451 = vcmp.gt.f32.partialorder %v400, 0.0
  %vm452 = vcmp.gt.f32.partialorder %v402, 0.0
  %vm453 = vcmp.gt.f32.partialorder %v443, 0.0
  %vm454 = vcmp.gt.f32.partialorder %v445, 0.0
  %v455 = vmul.f32 %v396, 0.01
  %v456 = vmul.f32 %v398, 0.01
  %v457 = vmul.f32 %v439, 0.01
  %v458 = vmul.f32 %v441, 0.01
  %v459 = vmul.f32 %v400, 0.01
  %v460 = vmul.f32 %v402, 0.01
  %v461 = vmul.f32 %v443, 0.01
  %v462 = vmul.f32 %v445, 0.01
  %v463 = vsel %vm447, %v396, %v455
  %v464 = vsel %vm448, %v398, %v456
  %v465 = vsel %vm449, %v439, %v457
  %v466 = vsel %vm450, %v441, %v458
  %v467 = vsel %vm451, %v400, %v459
  %v468 = vsel %vm452, %v402, %v460
  %v469 = vsel %vm453, %v443, %v461
  %v470 = vsel %vm454, %v445, %v462
  %471 = vst [vmem:[%s6] sm:$0xff] %v463
  %472 = vst [vmem:[%s6 + $0x8] sm:$0xff] %v464
  %473 = vst [vmem:[%s7] sm:$0xff] %v467
  %474 = vst [vmem:[%s7 + $0x8] sm:$0xff] %v468
  %v475 = vadd.f32 %v463, %v464
  %476 = vadd.xlane.f32.xlu0 %v475
  %v477 = vpop.xlane.xlu0 %476
  %v478 = vmul.f32 %v477, 0.00390625
  %v479 = vld [vmem:[%s4] sm:$0xff]
  %v480 = vmul.f32 %v478, %v479
  %vm481 = vcmask 39936
  %v482 = vsel %vm481, %v480, 0.0
  %v483 = vrot.slane %v482, 4
  %v484 = vadd.f32 %v482, %v483
  %v485 = vrot.slane %v484, 2
  %v486 = vadd.f32 %v484, %v485
  %v487 = vrot.slane %v486, 1
  %v488 = vadd.f32 %v486, %v487
  %v489 = vld [vmem:[%s5] sm:$0x1]
  %v490 = vadd.f32 %v488, %v489
  %vm491 = vcmask 32768
  %492 = vst.msk [vmem:[%s8] sm:$0x1] %vm491, %v490
  %s493 = scalar_lea.vmem %s6, 16
  %494 = vst [vmem:[%s493] sm:$0xff] %v465
  %495 = vst [vmem:[%s493 + $0x8] sm:$0xff] %v466
  %s496 = scalar_lea.vmem %s7, 16
  %497 = vst [vmem:[%s496] sm:$0xff] %v469
  %498 = vst [vmem:[%s496 + $0x8] sm:$0xff] %v470
  %v499 = vadd.f32 %v465, %v466
  %500 = vadd.xlane.f32.xlu0 %v499
  %v501 = vpop.xlane.xlu0 %500
  %v502 = vmul.f32 %v501, 0.00390625
  %v503 = vld [vmem:[%s4] sm:$0xff]
  %v504 = vmul.f32 %v502, %v503
  %v505 = vsel %vm481, %v504, 0.0
  %v506 = vrot.slane %v505, 4
  %v507 = vadd.f32 %v505, %v506
  %v508 = vrot.slane %v507, 2
  %v509 = vadd.f32 %v507, %v508
  %v510 = vrot.slane %v509, 1
  %v511 = vadd.f32 %v509, %v510
  %v512 = vld [vmem:[%s5] sm:$0x1]
  %v513 = vadd.f32 %v511, %v512
  %s514 = scalar_lea.vmem %s8, 1
  %515 = vst.msk [vmem:[%s514] sm:$0x1] %vm491, %v513
  // Predicated region
  $region26: #{dsn_no_decoder_forward.1} parent=0 // pred_check
    _
  $region27: #{dsn_no_decoder_forward.1} parent=0 // pred_check_branch
    %517 = sbr.rel (0) target = $region29
  $region28: #{dsn_no_decoder_forward.1} parent=0 // pred_region
    _
  $region29: #{dsn_no_decoder_forward.1} parent=0 // pred_fallthru
    _
  // Predicated region
  $region30: #{dsn_no_decoder_forward.1} parent=0 // pred_check
    _
  $region31: #{dsn_no_decoder_forward.1} parent=0 // pred_check_branch
    %519 = sbr.rel (0) target = $region33
  $region32: #{dsn_no_decoder_forward.1} parent=0 // pred_region
    _
  $region33: #{dsn_no_decoder_forward.1} parent=0 // pred_fallthru
    _
  // Predicated region
  $region34: #{dsn_no_decoder_forward.1} parent=0 // pred_check
    _
  $region35: #{dsn_no_decoder_forward.1} parent=0 // pred_check_branch
    %521 = sbr.rel (0) target = $region37
  $region36: #{dsn_no_decoder_forward.1} parent=0 // pred_region
    _
  $region37: #{dsn_no_decoder_forward.1} parent=0 // pred_fallthru
    _
  // Predicated region
  $region38: #{dsn_no_decoder_forward.1} parent=0 // pred_check
    _
  $region39: #{dsn_no_decoder_forward.1} parent=0 // pred_check_branch
    %523 = sbr.rel (0) target = $region41
  $region40: #{dsn_no_decoder_forward.1} parent=0 // pred_region
    _
  $region41: #{dsn_no_decoder_forward.1} parent=0 // pred_fallthru
    _
  // Predicated region
  $region42: #{dsn_no_decoder_forward.1} parent=0 // pred_check
    _
  $region43: #{dsn_no_decoder_forward.1} parent=0 // pred_check_branch
    %525 = sbr.rel (0) target = $region45
  $region44: #{dsn_no_decoder_forward.1} parent=0 // pred_region
    _
  $region45: #{dsn_no_decoder_forward.1} parent=0 // pred_fallthru
    _
  // Predicated region
  $region46: #{dsn_no_decoder_forward.1} parent=0 // pred_check
    _
  $region47: #{dsn_no_decoder_forward.1} parent=0 // pred_check_branch
    %527 = sbr.rel (0) target = $region49
  $region48: #{dsn_no_decoder_forward.1} parent=0 // pred_region
    _
  $region49: #{dsn_no_decoder_forward.1} parent=0 // pred_fallthru
    _

</llo_original>
